<compile_context>
chip_gen: v7x
topology: tpu7x:2x2x1
jax: 0.10.0
libtpu: 0.0.40
codegen_flags: <defaults>
</compile_context>

<pallas_src>
import functools

import jax
import jax.numpy as jnp
from jax.experimental import pallas as pl
from jax.experimental.pallas import tpu as pltpu


def _round_up(x, m):
    return (x + m - 1) // m * m


# ---------------------------------------------------------------------------
# Kernels
# ---------------------------------------------------------------------------

def _swiglu_block(x_ref, w13_ref, w2_ref):
    """One fused SwiGLU contribution: (tm, d) f32 partial output."""
    tn = w13_ref.shape[1] // 2
    x = x_ref[...].astype(w13_ref.dtype)                                  # (tm, d) bf16
    h13 = jnp.dot(x, w13_ref[...], preferred_element_type=jnp.float32)   # (tm, 2*tn) f32
    h1 = h13[:, :tn]
    h3 = h13[:, tn:]
    h = (h1 * jax.nn.sigmoid(h1)) * h3                                    # SiLU gate, f32
    return jnp.dot(h.astype(w2_ref.dtype), w2_ref[...],
                   preferred_element_type=jnp.float32)                    # (tm, d) f32


def mlp_kernel_resident(x_ref, w13_ref, w2_ref, o_ref):
    """Weights fully resident: 1-D grid over row tiles, no accumulator."""
    o_ref[...] = _swiglu_block(x_ref, w13_ref, w2_ref).astype(o_ref.dtype)


def mlp_kernel_stream_scratch(x_ref, w13_ref, w2_ref, o_ref, acc_ref):
    """Hidden axis streamed; f32 scratch accumulator (non-f32 outputs)."""
    n = pl.program_id(1)

    @pl.when(n == 0)
    def _():
        acc_ref[...] = jnp.zeros_like(acc_ref)

    acc_ref[...] += _swiglu_block(x_ref, w13_ref, w2_ref)

    @pl.when(n == pl.num_programs(1) - 1)
    def _():
        o_ref[...] = acc_ref[...].astype(o_ref.dtype)


def mlp_kernel_stream_inplace(x_ref, w13_ref, w2_ref, o_ref):
    """Hidden axis streamed; f32 output block used directly as the accumulator."""
    n = pl.program_id(1)

    @pl.when(n == 0)
    def _():
        o_ref[...] = jnp.zeros_like(o_ref)

    o_ref[...] += _swiglu_block(x_ref, w13_ref, w2_ref)


# ---------------------------------------------------------------------------
# Tile / VMEM configuration
# ---------------------------------------------------------------------------

def _vmem_budget_bytes():
    cap = 64 * 1024 * 1024
    try:
        info = pltpu.get_tpu_info()
        cap = int(getattr(info, "vmem_capacity_bytes", cap)) or cap
    except Exception:
        pass
    # ~1/8 headroom for compiler internal scratch; cap at 100 MiB on 128 MiB parts.
    return min((cap * 7) // 8, 100 * 1024 * 1024)


def _resident_vmem(tm, d, d_hidden, x_bytes, o_bytes):
    act = tm * d * (2 * x_bytes + 2 * o_bytes)        # double-buffered x + out
    wts = 12 * d * d_hidden                           # double-buffered w13 + w2 (bf16)
    mid = 14 * tm * d_hidden                          # f32 h13 + f32 h + bf16 h temporaries
    return act + wts + mid


def _stream_vmem(tm, tn, d, x_bytes, o_bytes, use_scratch):
    act = tm * d * (2 * x_bytes + 2 * o_bytes + (4 if use_scratch else 0))
    wts = 12 * d * tn
    mid = 14 * tm * tn
    return act + wts + mid


def _choose_config(M, d, d_hidden, x_bytes, o_bytes, use_scratch, budget):
    """Returns (row_tile_cap, tn, resident)."""
    m_cap = _round_up(min(M, 512), 8)
    tm_cands = [t for t in (512, 384, 256, 128, 64, 32, 16, 8) if t <= m_cap]
    if not tm_cands or tm_cands[0] != m_cap:
        tm_cands.insert(0, m_cap)

    # 1) Fully resident weights (no hidden grid axis) — don't accept tiny row tiles.
    min_resident_tm = min(128, m_cap)
    for tm in tm_cands:
        if tm < min_resident_tm:
            break
        if _resident_vmem(tm, d, d_hidden, x_bytes, o_bytes) <= budget:
            return tm, d_hidden, True

    # 2) Streaming: prioritize a large row tile (arithmetic intensity ~ tm), then tn.
    tn_cands = [c for c in range(min(d_hidden, 1024), 127, -128) if d_hidden % c == 0]
    if not tn_cands:
        tn_cands = [d_hidden]
    for tm in tm_cands:
        for tn in tn_cands:
            if _stream_vmem(tm, tn, d, x_bytes, o_bytes, use_scratch) <= budget:
                return tm, tn, False
    return tm_cands[-1], tn_cands[-1], False


def _pick_row_tile(M, tm_cap):
    """Returns (tm, M_pad); avoids padding when a reasonable divisor of M exists."""
    if M <= tm_cap:
        return M, M                      # single full-extent row block, no padding
    lo = max(8, (tm_cap // 2 // 8) * 8)
    for t in range(tm_cap - tm_cap % 8, lo - 1, -8):
        if M % t == 0:
            return t, M                  # exact tiling, no padding
    t = max(tm_cap - tm_cap % 8, 8)
    return t, _round_up(M, t)            # pad the tail tile


# ---------------------------------------------------------------------------
# Wrapper
# ---------------------------------------------------------------------------

@functools.partial(jax.jit, static_argnames=("tm", "tn"))
def mlp_forward(x, w1_t, w3_t, w2_t, *, tm=None, tn=None):
    """x: (B, T, d_model). w*_t are pre-transposed (in, out) Linear weights.

    tm / tn are optional caps/overrides for the row tile and hidden tile.
    """
    B, T, d = x.shape
    d_hidden = w1_t.shape[1]
    M = B * T

    assert d % 128 == 0, "d_model must be a multiple of 128 for lane-dense tiles"
    assert d_hidden % 128 == 0, "4*d_model must be a multiple of 128"

    x_bytes = jnp.dtype(x.dtype).itemsize
    o_bytes = x_bytes
    use_scratch = (jnp.dtype(x.dtype) != jnp.dtype(jnp.float32))
    budget = _vmem_budget_bytes()

    tm_auto, tn_auto, _ = _choose_config(M, d, d_hidden, x_bytes, o_bytes,
                                         use_scratch, budget)
    tn_eff = tn_auto if tn is None else tn
    assert d_hidden % tn_eff == 0 and tn_eff % 128 == 0, "bad hidden tile"
    resident = (tn_eff == d_hidden)

    tm_cap = tm_auto if tm is None else min(tm, _round_up(M, 8))
    tm_eff, M_pad = _pick_row_tile(M, tm_cap)
    grid_rows = M_pad // tm_eff

    # Give both v7x TensorCores work when a single row tile would cover everything
    # (cheap in resident mode: weights are fetched once regardless of row tiles).
    if resident and grid_rows == 1 and M_pad >= 16 and M_pad % 16 == 0:
        tm_eff = M_pad // 2
        grid_rows = 2

    # Fused fc_1/fc_3 weights, interleaved per hidden chunk:
    #   columns [n*2*tn, (n+1)*2*tn) = [w1 chunk n | w3 chunk n].
    compute_dtype = jnp.bfloat16
    n_chunks = d_hidden // tn_eff
    w1b = w1_t.astype(compute_dtype)
    w3b = w3_t.astype(compute_dtype)
    w2b = w2_t.astype(compute_dtype)
    w13 = jnp.concatenate(
        [w1b.reshape(d, n_chunks, tn_eff), w3b.reshape(d, n_chunks, tn_eff)],
        axis=2).reshape(d, n_chunks * 2 * tn_eff)

    x2 = x.reshape(M, d)
    if M_pad != M:
        x2 = jnp.pad(x2, ((0, M_pad - M), (0, 0)))

    if resident:
        vmem_need = _resident_vmem(tm_eff, d, d_hidden, x_bytes, o_bytes)
    else:
        vmem_need = _stream_vmem(tm_eff, tn_eff, d, x_bytes, o_bytes, use_scratch)
    vmem_limit = int(min(max(2 * vmem_need, 32 * 1024 * 1024), budget))

    n_w_reads = 1 if resident else grid_rows
    cost = pl.CostEstimate(
        flops=6 * M_pad * d * d_hidden,
        transcendentals=M_pad * d_hidden,
        bytes_accessed=(M_pad * d * x_bytes                    # x
                        + M_pad * d * o_bytes                  # out
                        + 3 * d * d_hidden * 2 * n_w_reads),   # weights (re-)streamed
    )

    out_shape = jax.ShapeDtypeStruct((M_pad, d), x.dtype)

    if resident:
        out2 = pl.pallas_call(
            mlp_kernel_resident,
            out_shape=out_shape,
            grid_spec=pltpu.PrefetchScalarGridSpec(
                num_scalar_prefetch=0,
                grid=(grid_rows,),
                in_specs=[
                    pl.BlockSpec((tm_eff, d), lambda i: (i, 0)),        # x row tile
                    pl.BlockSpec((d, 2 * d_hidden), lambda i: (0, 0)),  # fused W1|W3 (resident)
                    pl.BlockSpec((d_hidden, d), lambda i: (0, 0)),      # W2^T (resident)
                ],
                out_specs=pl.BlockSpec((tm_eff, d), lambda i: (i, 0)),
            ),
            compiler_params=pltpu.CompilerParams(
                dimension_semantics=("parallel",),
                vmem_limit_bytes=vmem_limit,
            ),
            cost_estimate=cost,
        )(x2, w13, w2b)
    else:
        in_specs = [
            pl.BlockSpec((tm_eff, d), lambda i, n: (i, 0)),      # x row tile (resident over n)
            pl.BlockSpec((d, 2 * tn_eff), lambda i, n: (0, n)),  # fused W1|W3 hidden slab
            pl.BlockSpec((tn_eff, d), lambda i, n: (n, 0)),      # W2^T hidden slab
        ]
        out_specs = pl.BlockSpec((tm_eff, d), lambda i, n: (i, 0))
        params = pltpu.CompilerParams(
            dimension_semantics=("parallel", "arbitrary"),
            vmem_limit_bytes=vmem_limit,
        )
        if use_scratch:
            out2 = pl.pallas_call(
                mlp_kernel_stream_scratch,
                out_shape=out_shape,
                grid_spec=pltpu.PrefetchScalarGridSpec(
                    num_scalar_prefetch=0,
                    grid=(grid_rows, n_chunks),
                    in_specs=in_specs,
                    out_specs=out_specs,
                    scratch_shapes=[pltpu.VMEM((tm_eff, d), jnp.float32)],
                ),
                compiler_params=params,
                cost_estimate=cost,
            )(x2, w13, w2b)
        else:
            out2 = pl.pallas_call(
                mlp_kernel_stream_inplace,
                out_shape=out_shape,
                grid_spec=pltpu.PrefetchScalarGridSpec(
                    num_scalar_prefetch=0,
                    grid=(grid_rows, n_chunks),
                    in_specs=in_specs,
                    out_specs=out_specs,
                ),
                compiler_params=params,
                cost_estimate=cost,
            )(x2, w13, w2b)

    return out2[:M].reshape(B, T, d)


def mlp_reference(x, w1_t, w3_t, w2_t):
    """Mirrors the kernel numerics: bf16 operands, f32 accumulation, f32 gate."""
    dt = jnp.bfloat16
    B, T, d = x.shape
    xb = x.reshape(-1, d).astype(dt)
    h1 = jnp.dot(xb, w1_t.astype(dt), preferred_element_type=jnp.float32)
    h3 = jnp.dot(xb, w3_t.astype(dt), preferred_element_type=jnp.float32)
    h = (h1 * jax.nn.sigmoid(h1)) * h3
    out = jnp.dot(h.astype(dt), w2_t.astype(dt), preferred_element_type=jnp.float32)
    return out.astype(x.dtype).reshape(B, T, d)


if __name__ == "__main__":
    # Small config (lane-friendly): d_model=128, 4*d_model=512, batch=2, seq=8.
    d_model = 128
    d_hidden = 4 * d_model
    B, T = 2, 8

    key = jax.random.PRNGKey(0)
    kx, k1, k2, k3 = jax.random.split(key, 4)

    x = jax.random.normal(kx, (B, T, d_model), dtype=jnp.float32)

    # Deterministic PyTorch-Linear-like init, stored pre-transposed as (in, out).
    def init_linear(k, fan_in, fan_out):
        bound = 1.0 / jnp.sqrt(fan_in)
        return jax.random.uniform(k, (fan_in, fan_out), jnp.float32, -bound, bound)

    w1_t = init_linear(k1, d_model, d_hidden)   # fc_1.weight.T
    w3_t = init_linear(k3, d_model, d_hidden)   # fc_3.weight.T
    w2_t = init_linear(k2, d_hidden, d_model)   # fc_2.weight.T

    ref = mlp_reference(x, w1_t, w3_t, w2_t)

    # Auto config: resident-weight path (weights fit VMEM at this size).
    out = jax.block_until_ready(mlp_forward(x, w1_t, w3_t, w2_t))
    assert out.shape == (B, T, d_model)
    assert jnp.allclose(out, ref, atol=2e-2, rtol=2e-2), "resident path mismatch"

    # Explicit hidden tiling: exercises the streaming/accumulating path too.
    out_s = jax.block_until_ready(mlp_forward(x, w1_t, w3_t, w2_t, tn=128))
    assert jnp.allclose(out_s, ref, atol=2e-2, rtol=2e-2), "streaming path mismatch"

    print("KERNEL_OK")
</pallas_src>

<mosaic_0001>
module attributes {stable_mosaic.version = 11 : i64} {
  func.func @mlp_kernel_resident(%arg0: i32, %arg1: memref<8x128xf32, #tpu.memory_space<vmem>>, %arg2: memref<128x1024xbf16, #tpu.memory_space<vmem>>, %arg3: memref<512x128xbf16, #tpu.memory_space<vmem>>, %arg4: memref<8x128xf32, #tpu.memory_space<vmem>>) attributes {dimension_semantics = [#tpu.dimension_semantics<parallel>], iteration_bounds = array<i64: 2>, scalar_prefetch = 0 : i64, scratch_operands = 0 : i64, tpu.core_type = #tpu.core_type<tc>, window_params = [{transform_indices = @transform_0, window_bounds = array<i64: 8, 128>}, {pipeline_mode = #tpu.pipeline_mode<synchronous>, transform_indices = @transform_1, window_bounds = array<i64: 128, 1024>}, {pipeline_mode = #tpu.pipeline_mode<synchronous>, transform_indices = @transform_2, window_bounds = array<i64: 512, 128>}, {transform_indices = @transform_3, window_bounds = array<i64: 8, 128>}]} {
    %c0 = arith.constant 0 : index
    %c0_0 = arith.constant 0 : index
    %0 = vector.load %arg1[%c0, %c0_0] : memref<8x128xf32, #tpu.memory_space<vmem>>, vector<8x128xf32>
    %1 = arith.truncf %0 : vector<8x128xf32> to vector<8x128xbf16>
    %c0_1 = arith.constant 0 : index
    %c0_2 = arith.constant 0 : index
    %2 = vector.load %arg2[%c0_1, %c0_2] : memref<128x1024xbf16, #tpu.memory_space<vmem>>, vector<128x1024xbf16>
    %cst = arith.constant dense<0.000000e+00> : vector<8x1024xf32>
    %3 = tpu.matmul %1, %2, %cst {dimension_numbers = #tpu.dot_dimension_numbers<[1], [0], [0], [1], [0, 0, 1, 1], [], []>} : vector<8x128xbf16>, vector<128x1024xbf16>, vector<8x1024xf32> -> vector<8x1024xf32>
    %4 = vector.extract_strided_slice %3 {offsets = [0, 0], sizes = [8, 512], strides = [1, 1]} : vector<8x1024xf32> to vector<8x512xf32>
    %5 = vector.extract_strided_slice %3 {offsets = [0, 512], sizes = [8, 512], strides = [1, 1]} : vector<8x1024xf32> to vector<8x512xf32>
    %6 = arith.negf %4 : vector<8x512xf32>
    %7 = math.exp %6 : vector<8x512xf32>
    %cst_3 = arith.constant 1.000000e+00 : f32
    %8 = vector.broadcast %cst_3 : f32 to vector<8x512xf32>
    %9 = arith.addf %8, %7 : vector<8x512xf32>
    %10 = arith.divf %8, %9 : vector<8x512xf32>
    %11 = arith.mulf %4, %10 : vector<8x512xf32>
    %12 = arith.mulf %11, %5 : vector<8x512xf32>
    %13 = arith.truncf %12 : vector<8x512xf32> to vector<8x512xbf16>
    %c0_4 = arith.constant 0 : index
    %c0_5 = arith.constant 0 : index
    %14 = vector.load %arg3[%c0_4, %c0_5] : memref<512x128xbf16, #tpu.memory_space<vmem>>, vector<512x128xbf16>
    %cst_6 = arith.constant dense<0.000000e+00> : vector<8x128xf32>
    %15 = tpu.matmul %13, %14, %cst_6 {dimension_numbers = #tpu.dot_dimension_numbers<[1], [0], [0], [1], [0, 0, 1, 1], [], []>} : vector<8x512xbf16>, vector<512x128xbf16>, vector<8x128xf32> -> vector<8x128xf32>
    %c0_7 = arith.constant 0 : index
    %c0_8 = arith.constant 0 : index
    %16 = vector.load %arg4[%c0_7, %c0_8] : memref<8x128xf32, #tpu.memory_space<vmem>>, vector<8x128xf32>
    tpu.vector_store %arg4[%c0_7, %c0_8], %15 {strides = array<i32>} : memref<8x128xf32, #tpu.memory_space<vmem>>, vector<8x128xf32>,
    return
  }
  func.func @transform_0(%arg0: i32) -> (i32, i32) {
    %c0_i32 = arith.constant 0 : i32
    %c0_i32_0 = arith.constant 0 : i32
    return %arg0, %c0_i32 : i32, i32
  }
  func.func @transform_1(%arg0: i32) -> (i32, i32) {
    %c0_i32 = arith.constant 0 : i32
    %c0_i32_0 = arith.constant 0 : i32
    %c0_i32_1 = arith.constant 0 : i32
    return %c0_i32, %c0_i32_0 : i32, i32
  }
  func.func @transform_2(%arg0: i32) -> (i32, i32) {
    %c0_i32 = arith.constant 0 : i32
    %c0_i32_0 = arith.constant 0 : i32
    %c0_i32_1 = arith.constant 0 : i32
    return %c0_i32, %c0_i32_0 : i32, i32
  }
  func.func @transform_3(%arg0: i32) -> (i32, i32) {
    %c0_i32 = arith.constant 0 : i32
    %c0_i32_0 = arith.constant 0 : i32
    return %arg0, %c0_i32 : i32, i32
  }
}

</mosaic_0001>

<llo_original>
// kernel: mlp_forward.1
$region0: #{mlp_forward.1}
  #allocation0 [shape = 'u32[]', space=smem, size = 0x4, offset = 0x4, fixed_abs, tag = 'smem constant byte address 0x4 - core index']
  #allocation1 [shape = 'u32[144,128]{1,0:T(1,128)}', space=vmem, size = 0x12000, scoped, tag = 'internal scratch']
  %s0 = inlined_call_operand.vmem [shape: f32[16,128], index: 0, kind: input, shape index: {}]
  %s1 = inlined_call_operand.vmem [shape: bf16[128,1024], index: 1, kind: input, shape index: {}]
  %s2 = inlined_call_operand.vmem [shape: bf16[512,128], index: 2, kind: input, shape index: {}]
  %s3 = inlined_call_operand.hbm [shape: f32[16,128], index: 3, kind: output, shape index: {}]
  %s4 = sld [smem:[#allocation0]]
  $region45: #{mlp_forward.1} parent=0
    _
  %s6 = ssub.s32 1, %s4
  %s7 = scalar_select 0, %s6, %s4
  $region1: #{mlp_forward.1} parent=0
    #allocation2 [shape = 'u8[8192]{0}', space=vmem, size = 0x2000, scoped, tag = 'output window, operand 0']
    #allocation3 [shape = 's32[2]{0}', space=sflag, size = 0x8, scoped, tag = 'scoped memory for mlp_forward.1']
    %8 = vsyncpa [#allocation3], 0
    %s9 = scalar_lea.sflag [#allocation3], 1
    %10 = vsyncpa %s9, 0
    loop: start=0, step=1, limit=4
    $region2: #{mlp_forward.1} parent=1 // loop_pre_header
      _
    $region3: #{mlp_forward.1} parent=1 // loop_header
      %s12 = sphi 0, %s16
      %p13 = scmp.ge.s32.totalorder %s12, 4
      %s22 = sphi 0, %s24
      %s25 = sphi 0, %s22
      %s26 = sphi 0, %s25
      %s42 = sphi 0, %s26
      %s46 = sphi 0, %s46
      %s48 = sphi 0, %s46
      %s49 = sphi 0, %s48
      %s63 = sphi 0, %s49
      %s67 = sphi 0, %s67
      %s69 = sphi 0, %s67
      %s70 = sphi 0, %s69
      %s84 = sphi 0, %s70
      %s90 = sphi 0, %s92
      %s93 = sphi 0, %s90
      %s94 = sphi 0, %s93
      %s110 = sphi 0, %s94
    $region4: #{mlp_forward.1} parent=1 // loop_header_branch
      %15 = sbr.rel (%p13) target = $region8
    $region5: #{mlp_forward.1} parent=1 // loop_body
      %s17 = ssub.s32 %s12, 1
      %s18 = ssub.s32 %s12, 2
      %s19 = sadd.s32 %s12, 1
      %s20 = ssub.s32 %s12, %s19
      %p21 = scmp.eq.s32.totalorder %s20, 0
      %s23 = sadd.s32 %s22, 1
      %s24 = scalar_select %p21, %s22, %s23
      %p27 = pneg %p21
      %p28 = scmp.eq.s32.totalorder %s12, 1
      %p29 = por %p27, %p28
      %p30 = scmp.ne.s32.totalorder %s22, %s25
      %p31 = scmp.eq.s32.totalorder %s12, 0
      %p32 = por %p30, %p31
      %p33 = scmp.ne.s32.totalorder %s22, %s25
      %p34 = scmp.eq.s32.totalorder %s17, 1
      %p35 = por %p33, %p34
      %p36 = scmp.ne.s32.totalorder %s25, %s26
      %p37 = scmp.eq.s32.totalorder %s17, 0
      %p38 = por %p36, %p37
      %p39 = scmp.ne.s32.totalorder %s25, %s26
      %p40 = scmp.eq.s32.totalorder %s18, 1
      %p41 = por %p39, %p40
      %p43 = scmp.ne.s32.totalorder %s26, %s42
      %p44 = scmp.eq.s32.totalorder %s18, 0
      %p45 = por %p43, %p44
      %s47 = sadd.s32 %s46, 1
      %p50 = scmp.eq.s32.totalorder %s12, 1
      %p51 = scmp.ne.s32.totalorder %s46, %s48
      %p52 = scmp.eq.s32.totalorder %s12, 0
      %p53 = por %p51, %p52
      %p54 = scmp.ne.s32.totalorder %s46, %s48
      %p55 = scmp.eq.s32.totalorder %s17, 1
      %p56 = por %p54, %p55
      %p57 = scmp.ne.s32.totalorder %s48, %s49
      %p58 = scmp.eq.s32.totalorder %s17, 0
      %p59 = por %p57, %p58
      %p60 = scmp.ne.s32.totalorder %s48, %s49
      %p61 = scmp.eq.s32.totalorder %s18, 1
      %p62 = por %p60, %p61
      %p64 = scmp.ne.s32.totalorder %s49, %s63
      %p65 = scmp.eq.s32.totalorder %s18, 0
      %p66 = por %p64, %p65
      %s68 = sadd.s32 %s67, 1
      %p71 = scmp.eq.s32.totalorder %s12, 1
      %p72 = scmp.ne.s32.totalorder %s67, %s69
      %p73 = scmp.eq.s32.totalorder %s12, 0
      %p74 = por %p72, %p73
      %p75 = scmp.ne.s32.totalorder %s67, %s69
      %p76 = scmp.eq.s32.totalorder %s17, 1
      %p77 = por %p75, %p76
      %p78 = scmp.ne.s32.totalorder %s69, %s70
      %p79 = scmp.eq.s32.totalorder %s17, 0
      %p80 = por %p78, %p79
      %p81 = scmp.ne.s32.totalorder %s69, %s70
      %p82 = scmp.eq.s32.totalorder %s18, 1
      %p83 = por %p81, %p82
      %p85 = scmp.ne.s32.totalorder %s70, %s84
      %p86 = scmp.eq.s32.totalorder %s18, 0
      %p87 = por %p85, %p86
      %s88 = ssub.s32 %s12, %s19
      %p89 = scmp.eq.s32.totalorder %s88, 0
      %s91 = sadd.s32 %s90, 1
      %s92 = scalar_select %p89, %s90, %s91
      %p95 = pneg %p89
      %p96 = scmp.eq.s32.totalorder %s12, 1
      %p97 = por %p95, %p96
      %p98 = scmp.ne.s32.totalorder %s90, %s93
      %p99 = scmp.eq.s32.totalorder %s12, 0
      %p100 = por %p98, %p99
      %p101 = scmp.ne.s32.totalorder %s90, %s93
      %p102 = scmp.eq.s32.totalorder %s17, 1
      %p103 = por %p101, %p102
      %p104 = scmp.ne.s32.totalorder %s93, %s94
      %p105 = scmp.eq.s32.totalorder %s17, 0
      %p106 = por %p104, %p105
      %p107 = scmp.ne.s32.totalorder %s93, %s94
      %p108 = scmp.eq.s32.totalorder %s18, 1
      %p109 = por %p107, %p108
      %p111 = scmp.ne.s32.totalorder %s94, %s110
      %p112 = scmp.eq.s32.totalorder %s18, 0
      %p113 = por %p111, %p112
      %p114 = scmp.le.s32.totalorder 1, %s12
      %p115 = scmp.lt.s32.totalorder %s12, 3
      %p116 = pnand %p114, %p115
      %p117 = pneg %p116
      // Predicated region
      $region9: #{mlp_forward.1} parent=5 // pred_check
        _
      $region10: #{mlp_forward.1} parent=5 // pred_check_branch
        %119 = sbr.rel (%p116) target = $region12
      $region11: #{mlp_forward.1} parent=5 // pred_region
        %s120 = ssub.s32 %s12, 1
        // Predicated region
        $region13: #{mlp_forward.1} parent=11 // pred_check
          %p121 = pneg %p59
        $region14: #{mlp_forward.1} parent=11 // pred_check_branch
          %123 = sbr.rel (%p121) target = $region16
        $region15: #{mlp_forward.1} parent=11 // pred_region
          _
        $region16: #{mlp_forward.1} parent=11 // pred_fallthru
          _
        // Predicated region
        $region17: #{mlp_forward.1} parent=11 // pred_check
          %p124 = pneg %p80
        $region18: #{mlp_forward.1} parent=11 // pred_check_branch
          %126 = sbr.rel (%p124) target = $region20
        $region19: #{mlp_forward.1} parent=11 // pred_region
          _
        $region20: #{mlp_forward.1} parent=11 // pred_fallthru
          _
      $region12: #{mlp_forward.1} parent=5 // pred_fallthru
        _
      %p127 = scmp.lt.s32.totalorder %s12, 2
      // Predicated region
      $region21: #{mlp_forward.1} parent=5 // pred_check
        %p128 = pneg %p127
      $region22: #{mlp_forward.1} parent=5 // pred_check_branch
        %130 = sbr.rel (%p128) target = $region24
      $region23: #{mlp_forward.1} parent=5 // pred_region
        // Predicated region
        $region25: #{mlp_forward.1} parent=23 // pred_check
          %p131 = pneg %p32
        $region26: #{mlp_forward.1} parent=23 // pred_check_branch
          %133 = sbr.rel (%p131) target = $region28
        $region27: #{mlp_forward.1} parent=23 // pred_region
          %p134 = scmp.lt.s32.totalorder %s12, 1
          %s135 = scalar_select %p134, %s12, 1
          %s136 = smul.addr %s135, 8
          %s137 = scalar_lea.vmem %s0, %s136
        $region28: #{mlp_forward.1} parent=23 // pred_fallthru
          _
      $region24: #{mlp_forward.1} parent=5 // pred_fallthru
        _
      %p138 = scmp.le.s32.totalorder 1, %s12
      %p139 = scmp.lt.s32.totalorder %s12, 3
      %p140 = pnand %p138, %p139
      %p141 = pneg %p140
      // Predicated region
      $region29: #{mlp_forward.1} parent=5 // pred_check
        _
      $region30: #{mlp_forward.1} parent=5 // pred_check_branch
        %143 = sbr.rel (%p140) target = $region32
      $region31: #{mlp_forward.1} parent=5 // pred_region
        %s144 = ssub.s32 %s12, 1
        %p145 = scmp.lt.s32.totalorder %s17, 1
        %s146 = scalar_select %p145, %s17, 1
        %s147 = smul.addr %s146, 8
        %s148 = scalar_lea.vmem %s0, %s147
        %p149 = pneg %p38
        %p150 = pneg %p35
        %p151 = pneg %p59
        %p152 = pneg %p56
        %p153 = pneg %p80
        %p154 = pneg %p77
        %p155 = pneg %p106
        %p156 = pneg %p103
        %s157 = sand.u32 %s93, 1
        %s158 = scalar_lea.sflag [#allocation3], %s157
        %s159 = sand.u32 %s93, 1
        %s160 = smul.addr %s159, 8
        %s161 = scalar_lea.vmem [#allocation2], %s160
        %p162 = scmp.lt.s32.totalorder %s17, 1
        %s163 = scalar_select %p162, %s17, 1
        %s164 = smul.addr %s163, 8
        %s165 = scalar_lea.vmem %s0, %s164
        %v167 = vld [vmem:[%s165] sm:$0xff]
        %v168 = vpack.c.bf16 %v167, %v167
        %v169 = vld [vmem:[%s1] sm:$0xff]
        %v170 = vld [vmem:[%s1 + $0x8] sm:$0xff]
        %v171 = vld [vmem:[%s1 + $0x10] sm:$0xff]
        %v172 = vld [vmem:[%s1 + $0x18] sm:$0xff]
        %v173 = vld [vmem:[%s1 + $0x20] sm:$0xff]
        %v174 = vld [vmem:[%s1 + $0x28] sm:$0xff]
        %v175 = vld [vmem:[%s1 + $0x30] sm:$0xff]
        %v176 = vld [vmem:[%s1 + $0x38] sm:$0xff]
        %v177 = vld [vmem:[%s1 + $0x40] sm:$0xff]
        %v178 = vld [vmem:[%s1 + $0x48] sm:$0xff]
        %v179 = vld [vmem:[%s1 + $0x50] sm:$0xff]
        %v180 = vld [vmem:[%s1 + $0x58] sm:$0xff]
        %v181 = vld [vmem:[%s1 + $0x60] sm:$0xff]
        %v182 = vld [vmem:[%s1 + $0x68] sm:$0xff]
        %v183 = vld [vmem:[%s1 + $0x70] sm:$0xff]
        %v184 = vld [vmem:[%s1 + $0x78] sm:$0xff]
        %v185 = vld [vmem:[%s1 + $0x80] sm:$0xff]
        %v186 = vld [vmem:[%s1 + $0x88] sm:$0xff]
        %v187 = vld [vmem:[%s1 + $0x90] sm:$0xff]
        %v188 = vld [vmem:[%s1 + $0x98] sm:$0xff]
        %v189 = vld [vmem:[%s1 + $0xa0] sm:$0xff]
        %v190 = vld [vmem:[%s1 + $0xa8] sm:$0xff]
        %v191 = vld [vmem:[%s1 + $0xb0] sm:$0xff]
        %v192 = vld [vmem:[%s1 + $0xb8] sm:$0xff]
        %v193 = vld [vmem:[%s1 + $0xc0] sm:$0xff]
        %v194 = vld [vmem:[%s1 + $0xc8] sm:$0xff]
        %v195 = vld [vmem:[%s1 + $0xd0] sm:$0xff]
        %v196 = vld [vmem:[%s1 + $0xd8] sm:$0xff]
        %v197 = vld [vmem:[%s1 + $0xe0] sm:$0xff]
        %v198 = vld [vmem:[%s1 + $0xe8] sm:$0xff]
        %v199 = vld [vmem:[%s1 + $0xf0] sm:$0xff]
        %v200 = vld [vmem:[%s1 + $0xf8] sm:$0xff]
        %v201 = vld [vmem:[%s1 + $0x100] sm:$0xff]
        %v202 = vld [vmem:[%s1 + $0x108] sm:$0xff]
        %v203 = vld [vmem:[%s1 + $0x110] sm:$0xff]
        %v204 = vld [vmem:[%s1 + $0x118] sm:$0xff]
        %v205 = vld [vmem:[%s1 + $0x120] sm:$0xff]
        %v206 = vld [vmem:[%s1 + $0x128] sm:$0xff]
        %v207 = vld [vmem:[%s1 + $0x130] sm:$0xff]
        %v208 = vld [vmem:[%s1 + $0x138] sm:$0xff]
        %v209 = vld [vmem:[%s1 + $0x140] sm:$0xff]
        %v210 = vld [vmem:[%s1 + $0x148] sm:$0xff]
        %v211 = vld [vmem:[%s1 + $0x150] sm:$0xff]
        %v212 = vld [vmem:[%s1 + $0x158] sm:$0xff]
        %v213 = vld [vmem:[%s1 + $0x160] sm:$0xff]
        %v214 = vld [vmem:[%s1 + $0x168] sm:$0xff]
        %v215 = vld [vmem:[%s1 + $0x170] sm:$0xff]
        %v216 = vld [vmem:[%s1 + $0x178] sm:$0xff]
        %v217 = vld [vmem:[%s1 + $0x180] sm:$0xff]
        %v218 = vld [vmem:[%s1 + $0x188] sm:$0xff]
        %v219 = vld [vmem:[%s1 + $0x190] sm:$0xff]
        %v220 = vld [vmem:[%s1 + $0x198] sm:$0xff]
        %v221 = vld [vmem:[%s1 + $0x1a0] sm:$0xff]
        %v222 = vld [vmem:[%s1 + $0x1a8] sm:$0xff]
        %v223 = vld [vmem:[%s1 + $0x1b0] sm:$0xff]
        %v224 = vld [vmem:[%s1 + $0x1b8] sm:$0xff]
        %v225 = vld [vmem:[%s1 + $0x1c0] sm:$0xff]
        %v226 = vld [vmem:[%s1 + $0x1c8] sm:$0xff]
        %v227 = vld [vmem:[%s1 + $0x1d0] sm:$0xff]
        %v228 = vld [vmem:[%s1 + $0x1d8] sm:$0xff]
        %v229 = vld [vmem:[%s1 + $0x1e0] sm:$0xff]
        %v230 = vld [vmem:[%s1 + $0x1e8] sm:$0xff]
        %v231 = vld [vmem:[%s1 + $0x1f0] sm:$0xff]
        %v232 = vld [vmem:[%s1 + $0x1f8] sm:$0xff]
        %v297 = vunpack.c.l.b16 %v169
        %v298 = vunpack.c.h.b16 %v169
        %v299 = vunpack.c.l.b16 %v170
        %v300 = vunpack.c.h.b16 %v170
        %v301 = vunpack.c.l.b16 %v171
        %v302 = vunpack.c.h.b16 %v171
        %v303 = vunpack.c.l.b16 %v172
        %v304 = vunpack.c.h.b16 %v172
        %v305 = vunpack.c.l.b16 %v173
        %v306 = vunpack.c.h.b16 %v173
        %v307 = vunpack.c.l.b16 %v174
        %v308 = vunpack.c.h.b16 %v174
        %v309 = vunpack.c.l.b16 %v175
        %v310 = vunpack.c.h.b16 %v175
        %v311 = vunpack.c.l.b16 %v176
        %v312 = vunpack.c.h.b16 %v176
        %v313 = vunpack.c.l.b16 %v177
        %v314 = vunpack.c.h.b16 %v177
        %v315 = vunpack.c.l.b16 %v178
        %v316 = vunpack.c.h.b16 %v178
        %v317 = vunpack.c.l.b16 %v179
        %v318 = vunpack.c.h.b16 %v179
        %v319 = vunpack.c.l.b16 %v180
        %v320 = vunpack.c.h.b16 %v180
        %v321 = vunpack.c.l.b16 %v181
        %v322 = vunpack.c.h.b16 %v181
        %v323 = vunpack.c.l.b16 %v182
        %v324 = vunpack.c.h.b16 %v182
        %v325 = vunpack.c.l.b16 %v183
        %v326 = vunpack.c.h.b16 %v183
        %v327 = vunpack.c.l.b16 %v184
        %v328 = vunpack.c.h.b16 %v184
        %v329 = vunpack.c.l.b16 %v185
        %v330 = vunpack.c.h.b16 %v185
        %v331 = vunpack.c.l.b16 %v186
        %v332 = vunpack.c.h.b16 %v186
        %v333 = vunpack.c.l.b16 %v187
        %v334 = vunpack.c.h.b16 %v187
        %v335 = vunpack.c.l.b16 %v188
        %v336 = vunpack.c.h.b16 %v188
        %v337 = vunpack.c.l.b16 %v189
        %v338 = vunpack.c.h.b16 %v189
        %v339 = vunpack.c.l.b16 %v190
        %v340 = vunpack.c.h.b16 %v190
        %v341 = vunpack.c.l.b16 %v191
        %v342 = vunpack.c.h.b16 %v191
        %v343 = vunpack.c.l.b16 %v192
        %v344 = vunpack.c.h.b16 %v192
        %v345 = vunpack.c.l.b16 %v193
        %v346 = vunpack.c.h.b16 %v193
        %v347 = vunpack.c.l.b16 %v194
        %v348 = vunpack.c.h.b16 %v194
        %v349 = vunpack.c.l.b16 %v195
        %v350 = vunpack.c.h.b16 %v195
        %v351 = vunpack.c.l.b16 %v196
        %v352 = vunpack.c.h.b16 %v196
        %v353 = vunpack.c.l.b16 %v197
        %v354 = vunpack.c.h.b16 %v197
        %v355 = vunpack.c.l.b16 %v198
        %v356 = vunpack.c.h.b16 %v198
        %v357 = vunpack.c.l.b16 %v199
        %v358 = vunpack.c.h.b16 %v199
        %v359 = vunpack.c.l.b16 %v200
        %v360 = vunpack.c.h.b16 %v200
        %v361 = vunpack.c.l.b16 %v201
        %v362 = vunpack.c.h.b16 %v201
        %v363 = vunpack.c.l.b16 %v202
        %v364 = vunpack.c.h.b16 %v202
        %v365 = vunpack.c.l.b16 %v203
        %v366 = vunpack.c.h.b16 %v203
        %v367 = vunpack.c.l.b16 %v204
        %v368 = vunpack.c.h.b16 %v204
        %v369 = vunpack.c.l.b16 %v205
        %v370 = vunpack.c.h.b16 %v205
        %v371 = vunpack.c.l.b16 %v206
        %v372 = vunpack.c.h.b16 %v206
        %v373 = vunpack.c.l.b16 %v207
        %v374 = vunpack.c.h.b16 %v207
        %v375 = vunpack.c.l.b16 %v208
        %v376 = vunpack.c.h.b16 %v208
        %v377 = vunpack.c.l.b16 %v209
        %v378 = vunpack.c.h.b16 %v209
        %v379 = vunpack.c.l.b16 %v210
        %v380 = vunpack.c.h.b16 %v210
        %v381 = vunpack.c.l.b16 %v211
        %v382 = vunpack.c.h.b16 %v211
        %v383 = vunpack.c.l.b16 %v212
        %v384 = vunpack.c.h.b16 %v212
        %v385 = vunpack.c.l.b16 %v213
        %v386 = vunpack.c.h.b16 %v213
        %v387 = vunpack.c.l.b16 %v214
        %v388 = vunpack.c.h.b16 %v214
        %v389 = vunpack.c.l.b16 %v215
        %v390 = vunpack.c.h.b16 %v215
        %v391 = vunpack.c.l.b16 %v216
        %v392 = vunpack.c.h.b16 %v216
        %v393 = vunpack.c.l.b16 %v217
        %v394 = vunpack.c.h.b16 %v217
        %v395 = vunpack.c.l.b16 %v218
        %v396 = vunpack.c.h.b16 %v218
        %v397 = vunpack.c.l.b16 %v219
        %v398 = vunpack.c.h.b16 %v219
        %v399 = vunpack.c.l.b16 %v220
        %v400 = vunpack.c.h.b16 %v220
        %v401 = vunpack.c.l.b16 %v221
        %v402 = vunpack.c.h.b16 %v221
        %v403 = vunpack.c.l.b16 %v222
        %v404 = vunpack.c.h.b16 %v222
        %v405 = vunpack.c.l.b16 %v223
        %v406 = vunpack.c.h.b16 %v223
        %v407 = vunpack.c.l.b16 %v224
        %v408 = vunpack.c.h.b16 %v224
        %v409 = vunpack.c.l.b16 %v225
        %v410 = vunpack.c.h.b16 %v225
        %v411 = vunpack.c.l.b16 %v226
        %v412 = vunpack.c.h.b16 %v226
        %v413 = vunpack.c.l.b16 %v227
        %v414 = vunpack.c.h.b16 %v227
        %v415 = vunpack.c.l.b16 %v228
        %v416 = vunpack.c.h.b16 %v228
        %v417 = vunpack.c.l.b16 %v229
        %v418 = vunpack.c.h.b16 %v229
        %v419 = vunpack.c.l.b16 %v230
        %v420 = vunpack.c.h.b16 %v230
        %v421 = vunpack.c.l.b16 %v231
        %v422 = vunpack.c.h.b16 %v231
        %v423 = vunpack.c.l.b16 %v232
        %v424 = vunpack.c.h.b16 %v232
        %v425 = vpack.c.b16 %v305, %v297
        %v426 = vpack.c.b16 %v306, %v298
        %v427 = vpack.c.b16 %v307, %v299
        %v428 = vpack.c.b16 %v308, %v300
        %v429 = vpack.c.b16 %v309, %v301
        %v430 = vpack.c.b16 %v310, %v302
        %v431 = vpack.c.b16 %v311, %v303
        %v432 = vpack.c.b16 %v312, %v304
        %v433 = vpack.c.b16 %v321, %v313
        %v434 = vpack.c.b16 %v322, %v314
        %v435 = vpack.c.b16 %v323, %v315
        %v436 = vpack.c.b16 %v324, %v316
        %v437 = vpack.c.b16 %v325, %v317
        %v438 = vpack.c.b16 %v326, %v318
        %v439 = vpack.c.b16 %v327, %v319
        %v440 = vpack.c.b16 %v328, %v320
        %v441 = vpack.c.b16 %v337, %v329
        %v442 = vpack.c.b16 %v338, %v330
        %v443 = vpack.c.b16 %v339, %v331
        %v444 = vpack.c.b16 %v340, %v332
        %v445 = vpack.c.b16 %v341, %v333
        %v446 = vpack.c.b16 %v342, %v334
        %v447 = vpack.c.b16 %v343, %v335
        %v448 = vpack.c.b16 %v344, %v336
        %v449 = vpack.c.b16 %v353, %v345
        %v450 = vpack.c.b16 %v354, %v346
        %v451 = vpack.c.b16 %v355, %v347
        %v452 = vpack.c.b16 %v356, %v348
        %v453 = vpack.c.b16 %v357, %v349
        %v454 = vpack.c.b16 %v358, %v350
        %v455 = vpack.c.b16 %v359, %v351
        %v456 = vpack.c.b16 %v360, %v352
        %v457 = vpack.c.b16 %v369, %v361
        %v458 = vpack.c.b16 %v370, %v362
        %v459 = vpack.c.b16 %v371, %v363
        %v460 = vpack.c.b16 %v372, %v364
        %v461 = vpack.c.b16 %v373, %v365
        %v462 = vpack.c.b16 %v374, %v366
        %v463 = vpack.c.b16 %v375, %v367
        %v464 = vpack.c.b16 %v376, %v368
        %v465 = vpack.c.b16 %v385, %v377
        %v466 = vpack.c.b16 %v386, %v378
        %v467 = vpack.c.b16 %v387, %v379
        %v468 = vpack.c.b16 %v388, %v380
        %v469 = vpack.c.b16 %v389, %v381
        %v470 = vpack.c.b16 %v390, %v382
        %v471 = vpack.c.b16 %v391, %v383
        %v472 = vpack.c.b16 %v392, %v384
        %v473 = vpack.c.b16 %v401, %v393
        %v474 = vpack.c.b16 %v402, %v394
        %v475 = vpack.c.b16 %v403, %v395
        %v476 = vpack.c.b16 %v404, %v396
        %v477 = vpack.c.b16 %v405, %v397
        %v478 = vpack.c.b16 %v406, %v398
        %v479 = vpack.c.b16 %v407, %v399
        %v480 = vpack.c.b16 %v408, %v400
        %v481 = vpack.c.b16 %v417, %v409
        %v482 = vpack.c.b16 %v418, %v410
        %v483 = vpack.c.b16 %v419, %v411
        %v484 = vpack.c.b16 %v420, %v412
        %v485 = vpack.c.b16 %v421, %v413
        %v486 = vpack.c.b16 %v422, %v414
        %v487 = vpack.c.b16 %v423, %v415
        %v488 = vpack.c.b16 %v424, %v416
        %553 = vmatprep.subr.bf16.mxu0 %v426
        %554 = vmatpush1.bf16.msra.mxu0 %v425
        %555 = vmatprep.subr.bf16.mxu0 %v434
        %556 = vmatpush1.bf16.msra.mxu0 %v433
        %557 = vmatprep.subr.bf16.mxu0 %v442
        %558 = vmatpush1.bf16.msra.mxu0 %v441
        %559 = vmatprep.subr.bf16.mxu0 %v450
        %560 = vmatpush1.bf16.msra.mxu0 %v449
        %561 = vmatprep.subr.bf16.mxu0 %v458
        %562 = vmatpush1.bf16.msra.mxu0 %v457
        %563 = vmatprep.subr.bf16.mxu0 %v466
        %564 = vmatpush1.bf16.msra.mxu0 %v465
        %565 = vmatprep.subr.bf16.mxu0 %v474
        %566 = vmatpush1.bf16.msra.mxu0 %v473
        %567 = vmatprep.subr.bf16.mxu0 %v482
        %568 = vmatpush1.bf16.msra.mxu0 %v481
        %569 = vmatprep.subr.bf16.mxu0 0
        %570 = vmatpush1.bf16.msra.mxu0 0
        %571 = vmatprep.subr.bf16.mxu0 0
        %572 = vmatpush1.bf16.msra.mxu0 0
        %573 = vmatprep.subr.bf16.mxu0 0
        %574 = vmatpush1.bf16.msra.mxu0 0
        %575 = vmatprep.subr.bf16.mxu0 0
        %576 = vmatpush1.bf16.msra.mxu0 0
        %577 = vmatprep.subr.bf16.mxu0 0
        %578 = vmatpush1.bf16.msra.mxu0 0
        %579 = vmatprep.subr.bf16.mxu0 0
        %580 = vmatpush1.bf16.msra.mxu0 0
        %581 = vmatprep.subr.bf16.mxu0 0
        %582 = vmatpush1.bf16.msra.mxu0 0
        %583 = vmatprep.subr.bf16.mxu0 0
        %584 = vmatpush1.bf16.msra.mxu0 0
        %585 = vmatprep.mubr.bf16.mxu0 0
        %586 = vmatmul.mubr.bf16.gmra.mrb[0].mxu0 %v168
        %v587 = vpop.f32.mrb[0].mxu0
        %v588 = vadd.f32 0.0, %v587
        %v589 = vpop.f32.mrb[0].mxu0
        %v590 = vadd.f32 0.0, %v589
        %v591 = vpop.f32.mrb[0].mxu0
        %v592 = vpop.f32.mrb[0].mxu0
        %593 = vdwg.mxu0
        %594 = vmatprep.subr.bf16.mxu0 %v428
        %595 = vmatpush1.bf16.msra.mxu0 %v427
        %596 = vmatprep.subr.bf16.mxu0 %v436
        %597 = vmatpush1.bf16.msra.mxu0 %v435
        %598 = vmatprep.subr.bf16.mxu0 %v444
        %599 = vmatpush1.bf16.msra.mxu0 %v443
        %600 = vmatprep.subr.bf16.mxu0 %v452
        %601 = vmatpush1.bf16.msra.mxu0 %v451
        %602 = vmatprep.subr.bf16.mxu0 %v460
        %603 = vmatpush1.bf16.msra.mxu0 %v459
        %604 = vmatprep.subr.bf16.mxu0 %v468
        %605 = vmatpush1.bf16.msra.mxu0 %v467
        %606 = vmatprep.subr.bf16.mxu0 %v476
        %607 = vmatpush1.bf16.msra.mxu0 %v475
        %608 = vmatprep.subr.bf16.mxu0 %v484
        %609 = vmatpush1.bf16.msra.mxu0 %v483
        %610 = vmatprep.subr.bf16.mxu0 0
        %611 = vmatpush1.bf16.msra.mxu0 0
        %612 = vmatprep.subr.bf16.mxu0 0
        %613 = vmatpush1.bf16.msra.mxu0 0
        %614 = vmatprep.subr.bf16.mxu0 0
        %615 = vmatpush1.bf16.msra.mxu0 0
        %616 = vmatprep.subr.bf16.mxu0 0
        %617 = vmatpush1.bf16.msra.mxu0 0
        %618 = vmatprep.subr.bf16.mxu0 0
        %619 = vmatpush1.bf16.msra.mxu0 0
        %620 = vmatprep.subr.bf16.mxu0 0
        %621 = vmatpush1.bf16.msra.mxu0 0
        %622 = vmatprep.subr.bf16.mxu0 0
        %623 = vmatpush1.bf16.msra.mxu0 0
        %624 = vmatprep.subr.bf16.mxu0 0
        %625 = vmatpush1.bf16.msra.mxu0 0
        %626 = vmatprep.mubr.bf16.mxu0 0
        %627 = vmatmul.mubr.bf16.gmra.mrb[0].mxu0 %v168
        %v628 = vpop.f32.mrb[0].mxu0
        %v629 = vadd.f32 0.0, %v628
        %v630 = vpop.f32.mrb[0].mxu0
        %v631 = vadd.f32 0.0, %v630
        %v632 = vpop.f32.mrb[0].mxu0
        %v633 = vpop.f32.mrb[0].mxu0
        %634 = vdwg.mxu0
        %635 = vmatprep.subr.bf16.mxu0 %v430
        %636 = vmatpush1.bf16.msra.mxu0 %v429
        %637 = vmatprep.subr.bf16.mxu0 %v438
        %638 = vmatpush1.bf16.msra.mxu0 %v437
        %639 = vmatprep.subr.bf16.mxu0 %v446
        %640 = vmatpush1.bf16.msra.mxu0 %v445
        %641 = vmatprep.subr.bf16.mxu0 %v454
        %642 = vmatpush1.bf16.msra.mxu0 %v453
        %643 = vmatprep.subr.bf16.mxu0 %v462
        %644 = vmatpush1.bf16.msra.mxu0 %v461
        %645 = vmatprep.subr.bf16.mxu0 %v470
        %646 = vmatpush1.bf16.msra.mxu0 %v469
        %647 = vmatprep.subr.bf16.mxu0 %v478
        %648 = vmatpush1.bf16.msra.mxu0 %v477
        %649 = vmatprep.subr.bf16.mxu0 %v486
        %650 = vmatpush1.bf16.msra.mxu0 %v485
        %651 = vmatprep.subr.bf16.mxu0 0
        %652 = vmatpush1.bf16.msra.mxu0 0
        %653 = vmatprep.subr.bf16.mxu0 0
        %654 = vmatpush1.bf16.msra.mxu0 0
        %655 = vmatprep.subr.bf16.mxu0 0
        %656 = vmatpush1.bf16.msra.mxu0 0
        %657 = vmatprep.subr.bf16.mxu0 0
        %658 = vmatpush1.bf16.msra.mxu0 0
        %659 = vmatprep.subr.bf16.mxu0 0
        %660 = vmatpush1.bf16.msra.mxu0 0
        %661 = vmatprep.subr.bf16.mxu0 0
        %662 = vmatpush1.bf16.msra.mxu0 0
        %663 = vmatprep.subr.bf16.mxu0 0
        %664 = vmatpush1.bf16.msra.mxu0 0
        %665 = vmatprep.subr.bf16.mxu0 0
        %666 = vmatpush1.bf16.msra.mxu0 0
        %667 = vmatprep.mubr.bf16.mxu0 0
        %668 = vmatmul.mubr.bf16.gmra.mrb[0].mxu0 %v168
        %v669 = vpop.f32.mrb[0].mxu0
        %v670 = vadd.f32 0.0, %v669
        %v671 = vpop.f32.mrb[0].mxu0
        %v672 = vadd.f32 0.0, %v671
        %v673 = vpop.f32.mrb[0].mxu0
        %v674 = vpop.f32.mrb[0].mxu0
        %675 = vdwg.mxu0
        %676 = vmatprep.subr.bf16.mxu0 %v432
        %677 = vmatpush1.bf16.msra.mxu0 %v431
        %678 = vmatprep.subr.bf16.mxu0 %v440
        %679 = vmatpush1.bf16.msra.mxu0 %v439
        %680 = vmatprep.subr.bf16.mxu0 %v448
        %681 = vmatpush1.bf16.msra.mxu0 %v447
        %682 = vmatprep.subr.bf16.mxu0 %v456
        %683 = vmatpush1.bf16.msra.mxu0 %v455
        %684 = vmatprep.subr.bf16.mxu0 %v464
        %685 = vmatpush1.bf16.msra.mxu0 %v463
        %686 = vmatprep.subr.bf16.mxu0 %v472
        %687 = vmatpush1.bf16.msra.mxu0 %v471
        %688 = vmatprep.subr.bf16.mxu0 %v480
        %689 = vmatpush1.bf16.msra.mxu0 %v479
        %690 = vmatprep.subr.bf16.mxu0 %v488
        %691 = vmatpush1.bf16.msra.mxu0 %v487
        %692 = vmatprep.subr.bf16.mxu0 0
        %693 = vmatpush1.bf16.msra.mxu0 0
        %694 = vmatprep.subr.bf16.mxu0 0
        %695 = vmatpush1.bf16.msra.mxu0 0
        %696 = vmatprep.subr.bf16.mxu0 0
        %697 = vmatpush1.bf16.msra.mxu0 0
        %698 = vmatprep.subr.bf16.mxu0 0
        %699 = vmatpush1.bf16.msra.mxu0 0
        %700 = vmatprep.subr.bf16.mxu0 0
        %701 = vmatpush1.bf16.msra.mxu0 0
        %702 = vmatprep.subr.bf16.mxu0 0
        %703 = vmatpush1.bf16.msra.mxu0 0
        %704 = vmatprep.subr.bf16.mxu0 0
        %705 = vmatpush1.bf16.msra.mxu0 0
        %706 = vmatprep.subr.bf16.mxu0 0
        %707 = vmatpush1.bf16.msra.mxu0 0
        %708 = vmatprep.mubr.bf16.mxu0 0
        %709 = vmatmul.mubr.bf16.gmra.mrb[0].mxu0 %v168
        %v710 = vpop.f32.mrb[0].mxu0
        %v711 = vadd.f32 0.0, %v710
        %v712 = vpop.f32.mrb[0].mxu0
        %v713 = vadd.f32 0.0, %v712
        %v714 = vpop.f32.mrb[0].mxu0
        %v715 = vpop.f32.mrb[0].mxu0
        %716 = vdwg.mxu0
        %v717 = vxor.u32 %v588, 2147483648
        %v718 = vxor.u32 %v590, 2147483648
        %v719 = vxor.u32 %v629, 2147483648
        %v720 = vxor.u32 %v631, 2147483648
        %v721 = vmul.f32 %v717, 1.442695
        %v722 = vpow.pop %v721
        %v723 = vmul.f32 %v718, 1.442695
        %v724 = vpow.pop %v723
        %v725 = vmul.f32 %v719, 1.442695
        %v726 = vpow.pop %v725
        %v727 = vmul.f32 %v720, 1.442695
        %v728 = vpow.pop %v727
        %v729 = vadd.f32 %v722, 1.0
        %v730 = vadd.f32 %v724, 1.0
        %v731 = vadd.f32 %v726, 1.0
        %v732 = vadd.f32 %v728, 1.0
        %v733 = vrcp.pop %v729
        %v734 = vmul.f32 1.0, %v733
        %v735 = vrcp.pop %v730
        %v736 = vmul.f32 1.0, %v735
        %v737 = vrcp.pop %v731
        %v738 = vmul.f32 1.0, %v737
        %v739 = vrcp.pop %v732
        %v740 = vmul.f32 1.0, %v739
        %v741 = vmul.f32 %v588, %v734
        %v742 = vmul.f32 %v590, %v736
        %v743 = vmul.f32 %v629, %v738
        %v744 = vmul.f32 %v631, %v740
        %v745 = vmul.f32 %v741, %v670
        %v746 = vmul.f32 %v742, %v672
        %v747 = vmul.f32 %v743, %v711
        %v748 = vmul.f32 %v744, %v713
        %v749 = vpack.c.bf16 %v745, %v745
        %v750 = vpack.c.bf16 %v746, %v746
        %v751 = vpack.c.bf16 %v747, %v747
        %v752 = vpack.c.bf16 %v748, %v748
        %v753 = vld [vmem:[%s2] sm:$0xf]
        %v754 = vld [vmem:[%s2 + $0x4] sm:$0xf]
        %v755 = vld [vmem:[%s2 + $0x8] sm:$0xf]
        %v756 = vld [vmem:[%s2 + $0xc] sm:$0xf]
        %v757 = vld [vmem:[%s2 + $0x10] sm:$0xf]
        %v758 = vld [vmem:[%s2 + $0x14] sm:$0xf]
        %v759 = vld [vmem:[%s2 + $0x18] sm:$0xf]
        %v760 = vld [vmem:[%s2 + $0x1c] sm:$0xf]
        %v761 = vld [vmem:[%s2 + $0x20] sm:$0xf]
        %v762 = vld [vmem:[%s2 + $0x24] sm:$0xf]
        %v763 = vld [vmem:[%s2 + $0x28] sm:$0xf]
        %v764 = vld [vmem:[%s2 + $0x2c] sm:$0xf]
        %v765 = vld [vmem:[%s2 + $0x30] sm:$0xf]
        %v766 = vld [vmem:[%s2 + $0x34] sm:$0xf]
        %v767 = vld [vmem:[%s2 + $0x38] sm:$0xf]
        %v768 = vld [vmem:[%s2 + $0x3c] sm:$0xf]
        %v769 = vld [vmem:[%s2 + $0x40] sm:$0xf]
        %v770 = vld [vmem:[%s2 + $0x44] sm:$0xf]
        %v771 = vld [vmem:[%s2 + $0x48] sm:$0xf]
        %v772 = vld [vmem:[%s2 + $0x4c] sm:$0xf]
        %v773 = vld [vmem:[%s2 + $0x50] sm:$0xf]
        %v774 = vld [vmem:[%s2 + $0x54] sm:$0xf]
        %v775 = vld [vmem:[%s2 + $0x58] sm:$0xf]
        %v776 = vld [vmem:[%s2 + $0x5c] sm:$0xf]
        %v777 = vld [vmem:[%s2 + $0x60] sm:$0xf]
        %v778 = vld [vmem:[%s2 + $0x64] sm:$0xf]
        %v779 = vld [vmem:[%s2 + $0x68] sm:$0xf]
        %v780 = vld [vmem:[%s2 + $0x6c] sm:$0xf]
        %v781 = vld [vmem:[%s2 + $0x70] sm:$0xf]
        %v782 = vld [vmem:[%s2 + $0x74] sm:$0xf]
        %v783 = vld [vmem:[%s2 + $0x78] sm:$0xf]
        %v784 = vld [vmem:[%s2 + $0x7c] sm:$0xf]
        %v785 = vld [vmem:[%s2 + $0x80] sm:$0xf]
        %v786 = vld [vmem:[%s2 + $0x84] sm:$0xf]
        %v787 = vld [vmem:[%s2 + $0x88] sm:$0xf]
        %v788 = vld [vmem:[%s2 + $0x8c] sm:$0xf]
        %v789 = vld [vmem:[%s2 + $0x90] sm:$0xf]
        %v790 = vld [vmem:[%s2 + $0x94] sm:$0xf]
        %v791 = vld [vmem:[%s2 + $0x98] sm:$0xf]
        %v792 = vld [vmem:[%s2 + $0x9c] sm:$0xf]
        %v793 = vld [vmem:[%s2 + $0xa0] sm:$0xf]
        %v794 = vld [vmem:[%s2 + $0xa4] sm:$0xf]
        %v795 = vld [vmem:[%s2 + $0xa8] sm:$0xf]
        %v796 = vld [vmem:[%s2 + $0xac] sm:$0xf]
        %v797 = vld [vmem:[%s2 + $0xb0] sm:$0xf]
        %v798 = vld [vmem:[%s2 + $0xb4] sm:$0xf]
        %v799 = vld [vmem:[%s2 + $0xb8] sm:$0xf]
        %v800 = vld [vmem:[%s2 + $0xbc] sm:$0xf]
        %v801 = vld [vmem:[%s2 + $0xc0] sm:$0xf]
        %v802 = vld [vmem:[%s2 + $0xc4] sm:$0xf]
        %v803 = vld [vmem:[%s2 + $0xc8] sm:$0xf]
        %v804 = vld [vmem:[%s2 + $0xcc] sm:$0xf]
        %v805 = vld [vmem:[%s2 + $0xd0] sm:$0xf]
        %v806 = vld [vmem:[%s2 + $0xd4] sm:$0xf]
        %v807 = vld [vmem:[%s2 + $0xd8] sm:$0xf]
        %v808 = vld [vmem:[%s2 + $0xdc] sm:$0xf]
        %v809 = vld [vmem:[%s2 + $0xe0] sm:$0xf]
        %v810 = vld [vmem:[%s2 + $0xe4] sm:$0xf]
        %v811 = vld [vmem:[%s2 + $0xe8] sm:$0xf]
        %v812 = vld [vmem:[%s2 + $0xec] sm:$0xf]
        %v813 = vld [vmem:[%s2 + $0xf0] sm:$0xf]
        %v814 = vld [vmem:[%s2 + $0xf4] sm:$0xf]
        %v815 = vld [vmem:[%s2 + $0xf8] sm:$0xf]
        %v816 = vld [vmem:[%s2 + $0xfc] sm:$0xf]
        %v881 = vunpack.c.l.b16 %v753
        %v882 = vunpack.c.l.b16 %v754
        %v883 = vunpack.c.l.b16 %v755
        %v884 = vunpack.c.l.b16 %v756
        %v885 = vunpack.c.l.b16 %v757
        %v886 = vunpack.c.l.b16 %v758
        %v887 = vunpack.c.l.b16 %v759
        %v888 = vunpack.c.l.b16 %v760
        %v889 = vunpack.c.l.b16 %v761
        %v890 = vunpack.c.l.b16 %v762
        %v891 = vunpack.c.l.b16 %v763
        %v892 = vunpack.c.l.b16 %v764
        %v893 = vunpack.c.l.b16 %v765
        %v894 = vunpack.c.l.b16 %v766
        %v895 = vunpack.c.l.b16 %v767
        %v896 = vunpack.c.l.b16 %v768
        %v897 = vunpack.c.l.b16 %v769
        %v898 = vunpack.c.l.b16 %v770
        %v899 = vunpack.c.l.b16 %v771
        %v900 = vunpack.c.l.b16 %v772
        %v901 = vunpack.c.l.b16 %v773
        %v902 = vunpack.c.l.b16 %v774
        %v903 = vunpack.c.l.b16 %v775
        %v904 = vunpack.c.l.b16 %v776
        %v905 = vunpack.c.l.b16 %v777
        %v906 = vunpack.c.l.b16 %v778
        %v907 = vunpack.c.l.b16 %v779
        %v908 = vunpack.c.l.b16 %v780
        %v909 = vunpack.c.l.b16 %v781
        %v910 = vunpack.c.l.b16 %v782
        %v911 = vunpack.c.l.b16 %v783
        %v912 = vunpack.c.l.b16 %v784
        %v913 = vunpack.c.l.b16 %v785
        %v914 = vunpack.c.l.b16 %v786
        %v915 = vunpack.c.l.b16 %v787
        %v916 = vunpack.c.l.b16 %v788
        %v917 = vunpack.c.l.b16 %v789
        %v918 = vunpack.c.l.b16 %v790
        %v919 = vunpack.c.l.b16 %v791
        %v920 = vunpack.c.l.b16 %v792
        %v921 = vunpack.c.l.b16 %v793
        %v922 = vunpack.c.l.b16 %v794
        %v923 = vunpack.c.l.b16 %v795
        %v924 = vunpack.c.l.b16 %v796
        %v925 = vunpack.c.l.b16 %v797
        %v926 = vunpack.c.l.b16 %v798
        %v927 = vunpack.c.l.b16 %v799
        %v928 = vunpack.c.l.b16 %v800
        %v929 = vunpack.c.l.b16 %v801
        %v930 = vunpack.c.l.b16 %v802
        %v931 = vunpack.c.l.b16 %v803
        %v932 = vunpack.c.l.b16 %v804
        %v933 = vunpack.c.l.b16 %v805
        %v934 = vunpack.c.l.b16 %v806
        %v935 = vunpack.c.l.b16 %v807
        %v936 = vunpack.c.l.b16 %v808
        %v937 = vunpack.c.l.b16 %v809
        %v938 = vunpack.c.l.b16 %v810
        %v939 = vunpack.c.l.b16 %v811
        %v940 = vunpack.c.l.b16 %v812
        %v941 = vunpack.c.l.b16 %v813
        %v942 = vunpack.c.l.b16 %v814
        %v943 = vunpack.c.l.b16 %v815
        %v944 = vunpack.c.l.b16 %v816
        %v945 = vpack.c.b16 %v882, %v881
        %v946 = vpack.c.b16 %v884, %v883
        %v947 = vpack.c.b16 %v886, %v885
        %v948 = vpack.c.b16 %v888, %v887
        %v949 = vpack.c.b16 %v890, %v889
        %v950 = vpack.c.b16 %v892, %v891
        %v951 = vpack.c.b16 %v894, %v893
        %v952 = vpack.c.b16 %v896, %v895
        %v953 = vpack.c.b16 %v898, %v897
        %v954 = vpack.c.b16 %v900, %v899
        %v955 = vpack.c.b16 %v902, %v901
        %v956 = vpack.c.b16 %v904, %v903
        %v957 = vpack.c.b16 %v906, %v905
        %v958 = vpack.c.b16 %v908, %v907
        %v959 = vpack.c.b16 %v910, %v909
        %v960 = vpack.c.b16 %v912, %v911
        %v961 = vpack.c.b16 %v914, %v913
        %v962 = vpack.c.b16 %v916, %v915
        %v963 = vpack.c.b16 %v918, %v917
        %v964 = vpack.c.b16 %v920, %v919
        %v965 = vpack.c.b16 %v922, %v921
        %v966 = vpack.c.b16 %v924, %v923
        %v967 = vpack.c.b16 %v926, %v925
        %v968 = vpack.c.b16 %v928, %v927
        %v969 = vpack.c.b16 %v930, %v929
        %v970 = vpack.c.b16 %v932, %v931
        %v971 = vpack.c.b16 %v934, %v933
        %v972 = vpack.c.b16 %v936, %v935
        %v973 = vpack.c.b16 %v938, %v937
        %v974 = vpack.c.b16 %v940, %v939
        %v975 = vpack.c.b16 %v942, %v941
        %v976 = vpack.c.b16 %v944, %v943
        %1009 = vmatprep.subr.bf16.mxu0 0
        %1010 = vmatpush1.bf16.msra.mxu0 %v945
        %1011 = vmatprep.subr.bf16.mxu0 0
        %1012 = vmatpush1.bf16.msra.mxu0 %v946
        %1013 = vmatprep.subr.bf16.mxu0 0
        %1014 = vmatpush1.bf16.msra.mxu0 %v947
        %1015 = vmatprep.subr.bf16.mxu0 0
        %1016 = vmatpush1.bf16.msra.mxu0 %v948
        %1017 = vmatprep.subr.bf16.mxu0 0
        %1018 = vmatpush1.bf16.msra.mxu0 %v949
        %1019 = vmatprep.subr.bf16.mxu0 0
        %1020 = vmatpush1.bf16.msra.mxu0 %v950
        %1021 = vmatprep.subr.bf16.mxu0 0
        %1022 = vmatpush1.bf16.msra.mxu0 %v951
        %1023 = vmatprep.subr.bf16.mxu0 0
        %1024 = vmatpush1.bf16.msra.mxu0 %v952
        %1025 = vmatprep.subr.bf16.mxu0 0
        %1026 = vmatpush1.bf16.msra.mxu0 %v953
        %1027 = vmatprep.subr.bf16.mxu0 0
        %1028 = vmatpush1.bf16.msra.mxu0 %v954
        %1029 = vmatprep.subr.bf16.mxu0 0
        %1030 = vmatpush1.bf16.msra.mxu0 %v955
        %1031 = vmatprep.subr.bf16.mxu0 0
        %1032 = vmatpush1.bf16.msra.mxu0 %v956
        %1033 = vmatprep.subr.bf16.mxu0 0
        %1034 = vmatpush1.bf16.msra.mxu0 %v957
        %1035 = vmatprep.subr.bf16.mxu0 0
        %1036 = vmatpush1.bf16.msra.mxu0 %v958
        %1037 = vmatprep.subr.bf16.mxu0 0
        %1038 = vmatpush1.bf16.msra.mxu0 %v959
        %1039 = vmatprep.subr.bf16.mxu0 0
        %1040 = vmatpush1.bf16.msra.mxu0 %v960
        %1041 = vmatprep.mubr.bf16.mxu0 %v750
        %1042 = vmatmul.mubr.bf16.gmra.mrb[0].mxu0 %v749
        %v1043 = vpop.f32.mrb[0].mxu0
        %v1044 = vadd.f32 0.0, %v1043
        %v1045 = vpop.f32.mrb[0].mxu0
        %v1046 = vpop.f32.mrb[0].mxu0
        %v1047 = vpop.f32.mrb[0].mxu0
        %1048 = vdwg.mxu0
        %1049 = vmatprep.subr.bf16.mxu0 0
        %1050 = vmatpush1.bf16.msra.mxu0 %v961
        %1051 = vmatprep.subr.bf16.mxu0 0
        %1052 = vmatpush1.bf16.msra.mxu0 %v962
        %1053 = vmatprep.subr.bf16.mxu0 0
        %1054 = vmatpush1.bf16.msra.mxu0 %v963
        %1055 = vmatprep.subr.bf16.mxu0 0
        %1056 = vmatpush1.bf16.msra.mxu0 %v964
        %1057 = vmatprep.subr.bf16.mxu0 0
        %1058 = vmatpush1.bf16.msra.mxu0 %v965
        %1059 = vmatprep.subr.bf16.mxu0 0
        %1060 = vmatpush1.bf16.msra.mxu0 %v966
        %1061 = vmatprep.subr.bf16.mxu0 0
        %1062 = vmatpush1.bf16.msra.mxu0 %v967
        %1063 = vmatprep.subr.bf16.mxu0 0
        %1064 = vmatpush1.bf16.msra.mxu0 %v968
        %1065 = vmatprep.subr.bf16.mxu0 0
        %1066 = vmatpush1.bf16.msra.mxu0 %v969
        %1067 = vmatprep.subr.bf16.mxu0 0
        %1068 = vmatpush1.bf16.msra.mxu0 %v970
        %1069 = vmatprep.subr.bf16.mxu0 0
        %1070 = vmatpush1.bf16.msra.mxu0 %v971
        %1071 = vmatprep.subr.bf16.mxu0 0
        %1072 = vmatpush1.bf16.msra.mxu0 %v972
        %1073 = vmatprep.subr.bf16.mxu0 0
        %1074 = vmatpush1.bf16.msra.mxu0 %v973
        %1075 = vmatprep.subr.bf16.mxu0 0
        %1076 = vmatpush1.bf16.msra.mxu0 %v974
        %1077 = vmatprep.subr.bf16.mxu0 0
        %1078 = vmatpush1.bf16.msra.mxu0 %v975
        %1079 = vmatprep.subr.bf16.mxu0 0
        %1080 = vmatpush1.bf16.msra.mxu0 %v976
        %1081 = vmatprep.mubr.bf16.mxu0 %v752
        %1082 = vmatmul.mubr.bf16.gmra.mrb[0].mxu0 %v751
        %v1083 = vpop.f32.mrb[0].mxu0
        %v1084 = vadd.f32 %v1044, %v1083
        %v1085 = vpop.f32.mrb[0].mxu0
        %v1086 = vpop.f32.mrb[0].mxu0
        %v1087 = vpop.f32.mrb[0].mxu0
        %1088 = vdwg.mxu0
        %1089 = vst [vmem:[%s161] sm:$0xff] %v1084
        %s1090 = sand.u32 %s93, 1
        %s1091 = scalar_lea.sflag [#allocation3], %s1090
        %s1092 = sand.u32 %s93, 1
        %s1093 = smul.addr %s1092, 8
        %s1094 = scalar_lea.vmem [#allocation2], %s1093
        // Predicated region
        $region33: #{mlp_forward.1} parent=31 // pred_check
          %p1095 = pneg %p103
        $region34: #{mlp_forward.1} parent=31 // pred_check_branch
          %1097 = sbr.rel (%p1095) target = $region36
        $region35: #{mlp_forward.1} parent=31 // pred_region
          %s1099 = ssub.s32 128, 128
          %1100 = vsyncadd %s1091, %s1099
          %s1101 = smul.addr %s17, 128
          %s1102 = scalar_lea.hbm %s3, %s1101
          %s1104 = sshll.u32 %s1094, 4
          %s1105 = int_to_ptr.vmem [resolvable:$true] %s1104
          %1107 = dma.vmem_to_hbm [thread:$0]  %s1105, 128, %s1102, %s1091
        $region36: #{mlp_forward.1} parent=31 // pred_fallthru
          _
      $region32: #{mlp_forward.1} parent=5 // pred_fallthru
        _
      %p1108 = scmp.le.s32.totalorder 2, %s12
      // Predicated region
      $region37: #{mlp_forward.1} parent=5 // pred_check
        %p1109 = pneg %p1108
      $region38: #{mlp_forward.1} parent=5 // pred_check_branch
        %1111 = sbr.rel (%p1109) target = $region40
      $region39: #{mlp_forward.1} parent=5 // pred_region
        %s1112 = ssub.s32 %s12, 2
        // Predicated region
        $region41: #{mlp_forward.1} parent=39 // pred_check
          %p1113 = pneg %p109
        $region42: #{mlp_forward.1} parent=39 // pred_check_branch
          %1115 = sbr.rel (%p1113) target = $region44
        $region43: #{mlp_forward.1} parent=39 // pred_region
          %s1116 = sand.u32 %s94, 1
          %s1117 = scalar_lea.sflag [#allocation3], %s1116
          %s1118 = sand.u32 %s94, 1
          %s1119 = smul.addr %s1118, 8
          %s1120 = scalar_lea.vmem [#allocation2], %s1119
          %1121 = dma.done %s1117, 128
        $region44: #{mlp_forward.1} parent=39 // pred_fallthru
          _
      $region40: #{mlp_forward.1} parent=5 // pred_fallthru
        _
    $region6: #{mlp_forward.1} parent=1 // loop_footer
      %s16 = sadd.s32 1, %s12
    $region7: #{mlp_forward.1} parent=1 // loop_footer_branch
      %11 = sbr.rel target = $region3
    $region8: #{mlp_forward.1} parent=1 // loop_exit
      _
    %1122 = vsyncpa [#allocation3], 1
    %s1123 = scalar_lea.sflag [#allocation3], 1
    %1124 = vsyncpa %s1123, 1

</llo_original>
